<compile_context>
chip_gen: v7x
topology: tpu7x:2x2x1
jax: 0.10.0
libtpu: 0.0.40
codegen_flags: <defaults>
</compile_context>

<pallas_src>
import functools

import jax
import jax.numpy as jnp
from jax.experimental import pallas as pl
from jax.experimental.pallas import tpu as pltpu


def _round_up(x, m):
    return ((x + m - 1) // m) * m


def _cdiv(a, b):
    return -(-a // b)


def temporal_decoder_kernel(x_ref, w13_ref, b13_ref, w2_ref, b2_ref,
                            gamma_ref, beta_ref, o_ref,
                            *, hidden_p, output_dim, eps):
    x = x_ref[...]                                        # (tb, in_p), compute dtype

    # Fused [fc1 | fc3]: one wide MXU pass over the shared LHS.
    hr = jnp.dot(x, w13_ref[...], preferred_element_type=jnp.float32)
    hr = hr + b13_ref[...]                                # f32

    h = jnp.maximum(hr[:, :hidden_p], 0.0)                # relu(fc1(x)), f32
    res = hr[:, hidden_p:]                                # fc3(x), f32

    # fc2 (dropout is identity in eval mode). Cast back to the MXU dtype only
    # at the dot; elementwise math stays f32.
    y = jnp.dot(h.astype(w2_ref.dtype), w2_ref[...],
                preferred_element_type=jnp.float32) + b2_ref[...]

    z = y + res                                           # (tb, out_p) f32
    # Padded lanes of z are exactly 0 (weights/biases zero-padded), so the
    # plain sum already gives the correct mean over the REAL output_dim.
    inv_d = 1.0 / output_dim
    mean = jnp.sum(z, axis=-1, keepdims=True) * inv_d
    lane = jax.lax.broadcasted_iota(jnp.int32, z.shape, 1)
    diff = jnp.where(lane < output_dim, z - mean, 0.0)    # mask padded lanes
    var = jnp.sum(diff * diff, axis=-1, keepdims=True) * inv_d
    zn = (z - mean) * jax.lax.rsqrt(var + eps)
    o_ref[...] = (zn * gamma_ref[...] + beta_ref[...]).astype(o_ref.dtype)


def temporal_decoder(x, params, *, tb=256, compute_dtype=jnp.bfloat16,
                     eps=1e-5, vmem_budget_bytes=48 * 1024 * 1024):
    """TiDE TemporalDecoder forward.  x: (..., input_dim) float32."""
    orig_shape = x.shape
    input_dim = orig_shape[-1]
    if x.ndim > 2:                                        # fold leading dims into batch
        x = x.reshape(-1, input_dim)
    B = x.shape[0]

    hidden_dim = params["w1"].shape[1]
    output_dim = params["w2"].shape[1]

    # ---- 128-lane padded problem sizes -------------------------------------
    in_p = _round_up(input_dim, 128)
    hid_p = _round_up(hidden_dim, 128)
    out_p = _round_up(output_dim, 128)

    # ---- batch tile selection ----------------------------------------------
    b_pad8 = _round_up(B, 8)
    tb_eff = max(8, min(_round_up(tb, 8), b_pad8))
    # Keep >= 2 grid steps so v7x's two TensorCores both get work.
    if b_pad8 >= 16 and _cdiv(b_pad8, tb_eff) < 2:
        tb_eff = _round_up(_cdiv(b_pad8, 2), 8)

    cbytes = jnp.dtype(compute_dtype).itemsize
    w_bytes = (in_p * (hid_p + out_p) + hid_p * out_p) * cbytes
    vec_bytes = (hid_p + 4 * out_p) * 4                   # b13, b2, gamma, beta

    def vmem_estimate(t):
        # double-buffered x/out tiles + (conservatively) double-buffered weights
        return 2 * (w_bytes + vec_bytes + t * in_p * cbytes + t * out_p * 4) + (2 << 20)

    while tb_eff > 8 and vmem_estimate(tb_eff) > vmem_budget_bytes:
        tb_eff = max(8, _round_up(tb_eff // 2, 8))

    b_p = _round_up(b_pad8, tb_eff)
    grid = b_p // tb_eff

    # ---- pack / pad params (production code would pre-pack these) ----------
    def pad2(a, r, c):
        return jnp.pad(a, ((0, r - a.shape[0]), (0, c - a.shape[1])))

    w13 = jnp.concatenate([pad2(params["w1"], in_p, hid_p),
                           pad2(params["w3"], in_p, out_p)],
                          axis=1).astype(compute_dtype)
    b13 = jnp.concatenate([pad2(params["b1"], 1, hid_p),
                           pad2(params["b3"], 1, out_p)],
                          axis=1).astype(jnp.float32)
    w2 = pad2(params["w2"], hid_p, out_p).astype(compute_dtype)
    b2 = pad2(params["b2"], 1, out_p).astype(jnp.float32)
    gamma = pad2(params["gamma"], 1, out_p).astype(jnp.float32)
    beta = pad2(params["beta"], 1, out_p).astype(jnp.float32)

    xp = jnp.pad(x, ((0, b_p - B), (0, in_p - input_dim))).astype(compute_dtype)

    full = lambda shape: pl.BlockSpec(shape, lambda i: (0, 0))

    kernel = functools.partial(temporal_decoder_kernel,
                               hidden_p=hid_p, output_dim=output_dim, eps=eps)

    flops = 2 * b_p * (in_p * (hid_p + out_p) + hid_p * out_p)
    bytes_accessed = (b_p * in_p * cbytes + w_bytes + vec_bytes + b_p * out_p * 4)
    cost = pl.CostEstimate(flops=int(flops), transcendentals=int(b_p),
                           bytes_accessed=int(bytes_accessed))

    out = pl.pallas_call(
        kernel,
        out_shape=jax.ShapeDtypeStruct((b_p, out_p), x.dtype),
        grid_spec=pltpu.PrefetchScalarGridSpec(
            num_scalar_prefetch=0,
            grid=(grid,),
            in_specs=[
                pl.BlockSpec((tb_eff, in_p), lambda i: (i, 0)),   # x tile
                full((in_p, hid_p + out_p)),                      # [w1 | w3]
                full((1, hid_p + out_p)),                         # [b1 | b3]
                full((hid_p, out_p)),                             # w2
                full((1, out_p)),                                 # b2
                full((1, out_p)),                                 # ln gamma
                full((1, out_p)),                                 # ln beta
            ],
            out_specs=pl.BlockSpec((tb_eff, out_p), lambda i: (i, 0)),
        ),
        compiler_params=pltpu.CompilerParams(
            dimension_semantics=("parallel",),
            vmem_limit_bytes=int(min(vmem_budget_bytes,
                                     max(vmem_estimate(tb_eff),
                                         16 * 1024 * 1024)))),
        cost_estimate=cost,
    )(xp, w13, b13, w2, b2, gamma, beta)

    out = out[:B, :output_dim]
    if len(orig_shape) > 2:
        out = out.reshape(*orig_shape[:-1], output_dim)
    return out


def init_params(key, input_dim, hidden_dim, output_dim):
    ks = jax.random.split(key, 6)
    scale = 0.1
    return {
        "w1": scale * jax.random.normal(ks[0], (input_dim, hidden_dim), jnp.float32),
        "b1": scale * jax.random.normal(ks[1], (1, hidden_dim), jnp.float32),
        "w2": scale * jax.random.normal(ks[2], (hidden_dim, output_dim), jnp.float32),
        "b2": scale * jax.random.normal(ks[3], (1, output_dim), jnp.float32),
        "w3": scale * jax.random.normal(ks[4], (input_dim, output_dim), jnp.float32),
        "b3": scale * jax.random.normal(ks[5], (1, output_dim), jnp.float32),
        "gamma": jnp.ones((1, output_dim), jnp.float32),
        "beta": jnp.zeros((1, output_dim), jnp.float32),
    }


def reference(x, p, compute_dtype=jnp.float32):
    # compute_dtype=bfloat16 emulates the kernel's MXU input casts exactly.
    cast = lambda a: a.astype(compute_dtype).astype(jnp.float32)
    h = jnp.maximum(cast(x) @ cast(p["w1"]) + p["b1"], 0.0)
    y = cast(h) @ cast(p["w2"]) + p["b2"]
    res = cast(x) @ cast(p["w3"]) + p["b3"]
    z = y + res
    mean = jnp.mean(z, axis=-1, keepdims=True)
    var = jnp.mean((z - mean) ** 2, axis=-1, keepdims=True)
    return (z - mean) / jnp.sqrt(var + 1e-5) * p["gamma"] + p["beta"]


if __name__ == "__main__":
    key = jax.random.PRNGKey(0)
    k_x, k_p, k_x2, k_p2 = jax.random.split(key, 4)

    # --- case 1: nominal small shapes ----------------------------------------
    B, input_dim, hidden_dim, output_dim = 8, 32, 64, 32
    x = jax.random.normal(k_x, (B, input_dim), jnp.float32)
    params = init_params(k_p, input_dim, hidden_dim, output_dim)

    # f32 MXU path vs exact f32 reference (tight).
    out_f32 = jax.block_until_ready(
        temporal_decoder(x, params, compute_dtype=jnp.float32))
    assert out_f32.shape == (B, output_dim)
    assert jnp.allclose(out_f32, reference(x, params), atol=1e-4, rtol=1e-4)

    # bf16 MXU path (default) vs bf16-input-emulating reference (tight).
    out_bf16 = jax.block_until_ready(temporal_decoder(x, params))
    assert out_bf16.shape == (B, output_dim)
    assert jnp.allclose(out_bf16, reference(x, params, jnp.bfloat16),
                        atol=5e-3, rtol=5e-3)

    # --- case 2: ragged dims + 3-D input exercise padding + multi-step grid --
    B2, L2, in2, hid2, out2 = 6, 8, 20, 50, 24
    x2 = jax.random.normal(k_x2, (B2, L2, in2), jnp.float32)
    params2 = init_params(k_p2, in2, hid2, out2)
    out2_ = jax.block_until_ready(
        temporal_decoder(x2, params2, compute_dtype=jnp.float32))
    assert out2_.shape == (B2, L2, out2)
    assert jnp.allclose(out2_,
                        reference(x2.reshape(-1, in2), params2).reshape(B2, L2, out2),
                        atol=1e-4, rtol=1e-4)

    print("KERNEL_OK")
</pallas_src>

<mosaic_0001>
module attributes {stable_mosaic.version = 11 : i64} {
  func.func @temporal_decoder_kernel(%arg0: i32, %arg1: memref<8x128xf32, #tpu.memory_space<vmem>>, %arg2: memref<128x256xf32, #tpu.memory_space<vmem>>, %arg3: memref<1x256xf32, #tpu.memory_space<vmem>>, %arg4: memref<128x128xf32, #tpu.memory_space<vmem>>, %arg5: memref<1x128xf32, #tpu.memory_space<vmem>>, %arg6: memref<1x128xf32, #tpu.memory_space<vmem>>, %arg7: memref<1x128xf32, #tpu.memory_space<vmem>>, %arg8: memref<8x128xf32, #tpu.memory_space<vmem>>) attributes {dimension_semantics = [#tpu.dimension_semantics<parallel>], iteration_bounds = array<i64: 1>, scalar_prefetch = 0 : i64, scratch_operands = 0 : i64, tpu.core_type = #tpu.core_type<tc>, window_params = [{transform_indices = @transform_0, window_bounds = array<i64: 8, 128>}, {pipeline_mode = #tpu.pipeline_mode<synchronous>, transform_indices = @transform_1, window_bounds = array<i64: 128, 256>}, {pipeline_mode = #tpu.pipeline_mode<synchronous>, transform_indices = @transform_2, window_bounds = array<i64: 1, 256>}, {pipeline_mode = #tpu.pipeline_mode<synchronous>, transform_indices = @transform_3, window_bounds = array<i64: 128, 128>}, {pipeline_mode = #tpu.pipeline_mode<synchronous>, transform_indices = @transform_4, window_bounds = array<i64: 1, 128>}, {pipeline_mode = #tpu.pipeline_mode<synchronous>, transform_indices = @transform_5, window_bounds = array<i64: 1, 128>}, {pipeline_mode = #tpu.pipeline_mode<synchronous>, transform_indices = @transform_6, window_bounds = array<i64: 1, 128>}, {transform_indices = @transform_7, window_bounds = array<i64: 8, 128>}]} {
    %c0 = arith.constant 0 : index
    %c0_0 = arith.constant 0 : index
    %0 = vector.load %arg1[%c0, %c0_0] : memref<8x128xf32, #tpu.memory_space<vmem>>, vector<8x128xf32>
    %c0_1 = arith.constant 0 : index
    %c0_2 = arith.constant 0 : index
    %1 = vector.load %arg2[%c0_1, %c0_2] : memref<128x256xf32, #tpu.memory_space<vmem>>, vector<128x256xf32>
    %cst = arith.constant dense<0.000000e+00> : vector<8x256xf32>
    %2 = tpu.matmul %0, %1, %cst {dimension_numbers = #tpu.dot_dimension_numbers<[1], [0], [0], [1], [0, 0, 1, 1], [], []>} : vector<8x128xf32>, vector<128x256xf32>, vector<8x256xf32> -> vector<8x256xf32>
    %c0_3 = arith.constant 0 : index
    %c0_4 = arith.constant 0 : index
    %3 = vector.load %arg3[%c0_3, %c0_4] : memref<1x256xf32, #tpu.memory_space<vmem>>, vector<1x256xf32>
    %4 = vector.broadcast %3 : vector<1x256xf32> to vector<8x256xf32>
    %5 = arith.addf %2, %4 : vector<8x256xf32>
    %6 = vector.extract_strided_slice %5 {offsets = [0, 0], sizes = [8, 128], strides = [1, 1]} : vector<8x256xf32> to vector<8x128xf32>
    %cst_5 = arith.constant 0.000000e+00 : f32
    %7 = vector.broadcast %cst_5 : f32 to vector<8x128xf32>
    %8 = arith.maximumf %6, %7 : vector<8x128xf32>
    %9 = vector.extract_strided_slice %5 {offsets = [0, 128], sizes = [8, 128], strides = [1, 1]} : vector<8x256xf32> to vector<8x128xf32>
    %c0_6 = arith.constant 0 : index
    %c0_7 = arith.constant 0 : index
    %10 = vector.load %arg4[%c0_6, %c0_7] : memref<128x128xf32, #tpu.memory_space<vmem>>, vector<128x128xf32>
    %cst_8 = arith.constant dense<0.000000e+00> : vector<8x128xf32>
    %11 = tpu.matmul %8, %10, %cst_8 {dimension_numbers = #tpu.dot_dimension_numbers<[1], [0], [0], [1], [0, 0, 1, 1], [], []>} : vector<8x128xf32>, vector<128x128xf32>, vector<8x128xf32> -> vector<8x128xf32>
    %c0_9 = arith.constant 0 : index
    %c0_10 = arith.constant 0 : index
    %12 = vector.load %arg5[%c0_9, %c0_10] : memref<1x128xf32, #tpu.memory_space<vmem>>, vector<1x128xf32>
    %13 = vector.broadcast %12 : vector<1x128xf32> to vector<8x128xf32>
    %14 = arith.addf %11, %13 : vector<8x128xf32>
    %15 = arith.addf %14, %9 : vector<8x128xf32>
    %cst_11 = arith.constant dense<0.000000e+00> : vector<8xf32>
    %16 = vector.multi_reduction <add>, %15, %cst_11 [1] : vector<8x128xf32> to vector<8xf32>
    %17 = vector.shape_cast %16 : vector<8xf32> to vector<8x1xf32>
    %cst_12 = arith.constant 3.125000e-02 : f32
    %18 = vector.broadcast %cst_12 : f32 to vector<8x1xf32>
    %19 = arith.mulf %17, %18 : vector<8x1xf32>
    %20 = tpu.iota {dimensions = array<i32: 1>} : vector<8x128xi32>
    %c32_i32 = arith.constant 32 : i32
    %21 = vector.broadcast %c32_i32 : i32 to vector<8x128xi32>
    %22 = arith.cmpi slt, %20, %21 : vector<8x128xi32>
    %23 = vector.broadcast %19 : vector<8x1xf32> to vector<8x128xf32>
    %24 = arith.subf %15, %23 : vector<8x128xf32>
    %cst_13 = arith.constant 0.000000e+00 : f32
    %25 = vector.broadcast %cst_13 : f32 to vector<8x128xf32>
    %26 = arith.select %22, %24, %25 : vector<8x128xi1>, vector<8x128xf32>
    %27 = arith.mulf %26, %26 : vector<8x128xf32>
    %cst_14 = arith.constant dense<0.000000e+00> : vector<8xf32>
    %28 = vector.multi_reduction <add>, %27, %cst_14 [1] : vector<8x128xf32> to vector<8xf32>
    %29 = vector.shape_cast %28 : vector<8xf32> to vector<8x1xf32>
    %cst_15 = arith.constant 3.125000e-02 : f32
    %30 = vector.broadcast %cst_15 : f32 to vector<8x1xf32>
    %31 = arith.mulf %29, %30 : vector<8x1xf32>
    %32 = vector.broadcast %19 : vector<8x1xf32> to vector<8x128xf32>
    %33 = arith.subf %15, %32 : vector<8x128xf32>
    %cst_16 = arith.constant 9.99999974E-6 : f32
    %34 = vector.broadcast %cst_16 : f32 to vector<8x1xf32>
    %35 = arith.addf %31, %34 : vector<8x1xf32>
    %36 = math.rsqrt %35 : vector<8x1xf32>
    %37 = vector.broadcast %36 : vector<8x1xf32> to vector<8x128xf32>
    %38 = arith.mulf %33, %37 : vector<8x128xf32>
    %c0_17 = arith.constant 0 : index
    %c0_18 = arith.constant 0 : index
    %39 = vector.load %arg6[%c0_17, %c0_18] : memref<1x128xf32, #tpu.memory_space<vmem>>, vector<1x128xf32>
    %40 = vector.broadcast %39 : vector<1x128xf32> to vector<8x128xf32>
    %41 = arith.mulf %38, %40 : vector<8x128xf32>
    %c0_19 = arith.constant 0 : index
    %c0_20 = arith.constant 0 : index
    %42 = vector.load %arg7[%c0_19, %c0_20] : memref<1x128xf32, #tpu.memory_space<vmem>>, vector<1x128xf32>
    %43 = vector.broadcast %42 : vector<1x128xf32> to vector<8x128xf32>
    %44 = arith.addf %41, %43 : vector<8x128xf32>
    %c0_21 = arith.constant 0 : index
    %c0_22 = arith.constant 0 : index
    %45 = vector.load %arg8[%c0_21, %c0_22] : memref<8x128xf32, #tpu.memory_space<vmem>>, vector<8x128xf32>
    tpu.vector_store %arg8[%c0_21, %c0_22], %44 {strides = array<i32>} : memref<8x128xf32, #tpu.memory_space<vmem>>, vector<8x128xf32>,
    return
  }
  func.func @transform_0(%arg0: i32) -> (i32, i32) {
    %c0_i32 = arith.constant 0 : i32
    %c0_i32_0 = arith.constant 0 : i32
    return %arg0, %c0_i32 : i32, i32
  }
  func.func @transform_1(%arg0: i32) -> (i32, i32) {
    %c0_i32 = arith.constant 0 : i32
    %c0_i32_0 = arith.constant 0 : i32
    %c0_i32_1 = arith.constant 0 : i32
    return %c0_i32, %c0_i32_0 : i32, i32
  }
  func.func @transform_2(%arg0: i32) -> (i32, i32) {
    %c0_i32 = arith.constant 0 : i32
    %c0_i32_0 = arith.constant 0 : i32
    %c0_i32_1 = arith.constant 0 : i32
    return %c0_i32, %c0_i32_0 : i32, i32
  }
  func.func @transform_3(%arg0: i32) -> (i32, i32) {
    %c0_i32 = arith.constant 0 : i32
    %c0_i32_0 = arith.constant 0 : i32
    %c0_i32_1 = arith.constant 0 : i32
    return %c0_i32, %c0_i32_0 : i32, i32
  }
  func.func @transform_4(%arg0: i32) -> (i32, i32) {
    %c0_i32 = arith.constant 0 : i32
    %c0_i32_0 = arith.constant 0 : i32
    %c0_i32_1 = arith.constant 0 : i32
    return %c0_i32, %c0_i32_0 : i32, i32
  }
  func.func @transform_5(%arg0: i32) -> (i32, i32) {
    %c0_i32 = arith.constant 0 : i32
    %c0_i32_0 = arith.constant 0 : i32
    %c0_i32_1 = arith.constant 0 : i32
    return %c0_i32, %c0_i32_0 : i32, i32
  }
  func.func @transform_6(%arg0: i32) -> (i32, i32) {
    %c0_i32 = arith.constant 0 : i32
    %c0_i32_0 = arith.constant 0 : i32
    %c0_i32_1 = arith.constant 0 : i32
    return %c0_i32, %c0_i32_0 : i32, i32
  }
  func.func @transform_7(%arg0: i32) -> (i32, i32) {
    %c0_i32 = arith.constant 0 : i32
    %c0_i32_0 = arith.constant 0 : i32
    return %arg0, %c0_i32 : i32, i32
  }
}

</mosaic_0001>

<llo_original>
// kernel: tpu_custom_call.1
$region0: #{tpu_custom_call.1}
  #allocation0 [shape = 'u32[]', space=smem, size = 0x4, offset = 0x4, fixed_abs, tag = 'smem constant byte address 0x4 - core index']
  #allocation1 [shape = 'u32[144,128]{1,0:T(1,128)}', space=vmem, size = 0x12000, scoped, tag = 'internal scratch']
  %s0 = inlined_call_operand.hbm [shape: f32[8,128], index: 0, kind: input, shape index: {}]
  %s1 = inlined_call_operand.hbm [shape: f32[128,256], index: 1, kind: input, shape index: {}]
  %s2 = inlined_call_operand.vmem [shape: f32[1,256], index: 2, kind: input, shape index: {}]
  %s3 = inlined_call_operand.hbm [shape: f32[128,128], index: 3, kind: input, shape index: {}]
  %s4 = inlined_call_operand.vmem [shape: f32[1,128], index: 4, kind: input, shape index: {}]
  %s5 = inlined_call_operand.vmem [shape: f32[1,128], index: 5, kind: input, shape index: {}]
  %s6 = inlined_call_operand.vmem [shape: f32[1,128], index: 6, kind: input, shape index: {}]
  %s7 = inlined_call_operand.hbm [shape: f32[8,128], index: 7, kind: output, shape index: {}]
  %s8 = sld [smem:[#allocation0]]
  $region50: #{tpu_custom_call.1} parent=0
    _
  %s10 = ssub.s32 1, %s8
  %s11 = scalar_select 0, %s10, %s8
  $region1: #{tpu_custom_call.1} parent=0
    #allocation2 [shape = 'u8[4096]{0}', space=vmem, size = 0x1000, scoped, tag = 'input window, operand 0, single buffered']
    #allocation3 [shape = 's32[1]{0}', space=sflag, size = 0x4, scoped, tag = 'scoped memory for tpu_custom_call.1']
    #allocation4 [shape = 's32[1]{0}', space=sflag, size = 0x4, scoped, tag = 'scoped memory for tpu_custom_call.1']
    #allocation5 [shape = 'u8[131072]{0}', space=vmem, size = 0x20000, scoped, tag = 'input window, operand 1, single buffered']
    #allocation6 [shape = 's32[1]{0}', space=sflag, size = 0x4, scoped, tag = 'scoped memory for tpu_custom_call.1']
    #allocation7 [shape = 'u8[65536]{0}', space=vmem, size = 0x10000, scoped, tag = 'input window, operand 3, single buffered']
    #allocation8 [shape = 'u8[4096]{0}', space=vmem, size = 0x1000, scoped, tag = 'output window, operand 0, single buffered']
    %12 = vsyncpa [#allocation3], 0
    %13 = vsyncpa [#allocation6], 0
    %14 = vsyncpa [#allocation4], 0
    // Predicated region
    $region2: #{tpu_custom_call.1} parent=1 // pred_check
      _
    $region3: #{tpu_custom_call.1} parent=1 // pred_check_branch
      %16 = sbr.rel (0) target = $region5
    $region4: #{tpu_custom_call.1} parent=1 // pred_region
      %s18 = ssub.s32 128, 128
      %19 = vsyncadd [#allocation3], %s18
      %s21 = sshll.u32 [#allocation2], 4
      %s22 = int_to_ptr.vmem [resolvable:$true] %s21
      %24 = dma.hbm_to_vmem [thread:$0]  %s0, 128, %s22, [#allocation3]
    $region5: #{tpu_custom_call.1} parent=1 // pred_fallthru
      _
    // Predicated region
    $region6: #{tpu_custom_call.1} parent=1 // pred_check
      _
    $region7: #{tpu_custom_call.1} parent=1 // pred_check_branch
      %26 = sbr.rel (0) target = $region9
    $region8: #{tpu_custom_call.1} parent=1 // pred_region
      %s28 = ssub.s32 4096, 4096
      %29 = vsyncadd [#allocation6], %s28
      %s30 = sshll.u32 [#allocation5], 4
      %s31 = int_to_ptr.vmem [resolvable:$true] %s30
      %36 = dma.hbm_to_vmem [thread:$0]  %s1, 4096, %s31, [#allocation6], 256, 256, 16
    $region9: #{tpu_custom_call.1} parent=1 // pred_fallthru
      _
    // Predicated region
    $region10: #{tpu_custom_call.1} parent=1 // pred_check
      _
    $region11: #{tpu_custom_call.1} parent=1 // pred_check_branch
      %38 = sbr.rel (0) target = $region13
    $region12: #{tpu_custom_call.1} parent=1 // pred_region
      _
    $region13: #{tpu_custom_call.1} parent=1 // pred_fallthru
      _
    // Predicated region
    $region14: #{tpu_custom_call.1} parent=1 // pred_check
      _
    $region15: #{tpu_custom_call.1} parent=1 // pred_check_branch
      %40 = sbr.rel (0) target = $region17
    $region16: #{tpu_custom_call.1} parent=1 // pred_region
      %s42 = ssub.s32 2048, 2048
      %43 = vsyncadd [#allocation6], %s42
      %s44 = sshll.u32 [#allocation7], 4
      %s45 = int_to_ptr.vmem [resolvable:$true] %s44
      %50 = dma.hbm_to_vmem [thread:$0]  %s3, 2048, %s45, [#allocation6], 128, 128, 8
    $region17: #{tpu_custom_call.1} parent=1 // pred_fallthru
      _
    // Predicated region
    $region18: #{tpu_custom_call.1} parent=1 // pred_check
      _
    $region19: #{tpu_custom_call.1} parent=1 // pred_check_branch
      %52 = sbr.rel (0) target = $region21
    $region20: #{tpu_custom_call.1} parent=1 // pred_region
      _
    $region21: #{tpu_custom_call.1} parent=1 // pred_fallthru
      _
    // Predicated region
    $region22: #{tpu_custom_call.1} parent=1 // pred_check
      _
    $region23: #{tpu_custom_call.1} parent=1 // pred_check_branch
      %54 = sbr.rel (0) target = $region25
    $region24: #{tpu_custom_call.1} parent=1 // pred_region
      _
    $region25: #{tpu_custom_call.1} parent=1 // pred_fallthru
      _
    // Predicated region
    $region26: #{tpu_custom_call.1} parent=1 // pred_check
      _
    $region27: #{tpu_custom_call.1} parent=1 // pred_check_branch
      %56 = sbr.rel (0) target = $region29
    $region28: #{tpu_custom_call.1} parent=1 // pred_region
      _
    $region29: #{tpu_custom_call.1} parent=1 // pred_fallthru
      _
    // Predicated region
    $region30: #{tpu_custom_call.1} parent=1 // pred_check
      _
    $region31: #{tpu_custom_call.1} parent=1 // pred_check_branch
      %58 = sbr.rel (0) target = $region33
    $region32: #{tpu_custom_call.1} parent=1 // pred_region
      %59 = dma.done [#allocation3], 128
    $region33: #{tpu_custom_call.1} parent=1 // pred_fallthru
      _
    // Predicated region
    $region34: #{tpu_custom_call.1} parent=1 // pred_check
      _
    $region35: #{tpu_custom_call.1} parent=1 // pred_check_branch
      %61 = sbr.rel (0) target = $region37
    $region36: #{tpu_custom_call.1} parent=1 // pred_region
      %62 = dma.done [#allocation6], 4096
    $region37: #{tpu_custom_call.1} parent=1 // pred_fallthru
      _
    // Predicated region
    $region38: #{tpu_custom_call.1} parent=1 // pred_check
      _
    $region39: #{tpu_custom_call.1} parent=1 // pred_check_branch
      %64 = sbr.rel (0) target = $region41
    $region40: #{tpu_custom_call.1} parent=1 // pred_region
      %65 = dma.done [#allocation6], 2048
    $region41: #{tpu_custom_call.1} parent=1 // pred_fallthru
      _
    %v66 = vld [vmem:[#allocation2] sm:$0xff]
    %v67 = vld [vmem:[#allocation5] sm:$0xff]
    %v68 = vld [vmem:[#allocation5 + $0x8] sm:$0xff]
    %v69 = vld [vmem:[#allocation5 + $0x10] sm:$0xff]
    %v70 = vld [vmem:[#allocation5 + $0x18] sm:$0xff]
    %v71 = vld [vmem:[#allocation5 + $0x20] sm:$0xff]
    %v72 = vld [vmem:[#allocation5 + $0x28] sm:$0xff]
    %v73 = vld [vmem:[#allocation5 + $0x30] sm:$0xff]
    %v74 = vld [vmem:[#allocation5 + $0x38] sm:$0xff]
    %v75 = vld [vmem:[#allocation5 + $0x40] sm:$0xff]
    %v76 = vld [vmem:[#allocation5 + $0x48] sm:$0xff]
    %v77 = vld [vmem:[#allocation5 + $0x50] sm:$0xff]
    %v78 = vld [vmem:[#allocation5 + $0x58] sm:$0xff]
    %v79 = vld [vmem:[#allocation5 + $0x60] sm:$0xff]
    %v80 = vld [vmem:[#allocation5 + $0x68] sm:$0xff]
    %v81 = vld [vmem:[#allocation5 + $0x70] sm:$0xff]
    %v82 = vld [vmem:[#allocation5 + $0x78] sm:$0xff]
    %v83 = vld [vmem:[#allocation5 + $0x80] sm:$0xff]
    %v84 = vld [vmem:[#allocation5 + $0x88] sm:$0xff]
    %v85 = vld [vmem:[#allocation5 + $0x90] sm:$0xff]
    %v86 = vld [vmem:[#allocation5 + $0x98] sm:$0xff]
    %v87 = vld [vmem:[#allocation5 + $0xa0] sm:$0xff]
    %v88 = vld [vmem:[#allocation5 + $0xa8] sm:$0xff]
    %v89 = vld [vmem:[#allocation5 + $0xb0] sm:$0xff]
    %v90 = vld [vmem:[#allocation5 + $0xb8] sm:$0xff]
    %v91 = vld [vmem:[#allocation5 + $0xc0] sm:$0xff]
    %v92 = vld [vmem:[#allocation5 + $0xc8] sm:$0xff]
    %v93 = vld [vmem:[#allocation5 + $0xd0] sm:$0xff]
    %v94 = vld [vmem:[#allocation5 + $0xd8] sm:$0xff]
    %v95 = vld [vmem:[#allocation5 + $0xe0] sm:$0xff]
    %v96 = vld [vmem:[#allocation5 + $0xe8] sm:$0xff]
    %v97 = vld [vmem:[#allocation5 + $0xf0] sm:$0xff]
    %v98 = vld [vmem:[#allocation5 + $0xf8] sm:$0xff]
    %v99 = vld [vmem:[%s2] sm:$0x3]
    %v101 = vlaneseq
    %v102 = vshrl.u32 %v101, 7
    %v103 = vsub.s32 0, %v102
    %v104 = vrot.slane %v99, %v103
    %v105 = vlaneseq
    %v106 = vshrl.u32 %v105, 7
    %v107 = vsub.s32 1, %v106
    %v108 = vrot.slane %v99, %v107
    %111 = vmatprep.subr.mxu0 %v68
    %112 = vmatpush1.msra.mxu0 %v67
    %113 = vmatprep.subr.mxu0 %v70
    %114 = vmatpush1.msra.mxu0 %v69
    %115 = vmatprep.subr.mxu0 %v72
    %116 = vmatpush1.msra.mxu0 %v71
    %117 = vmatprep.subr.mxu0 %v74
    %118 = vmatpush1.msra.mxu0 %v73
    %119 = vmatprep.subr.mxu0 %v76
    %120 = vmatpush1.msra.mxu0 %v75
    %121 = vmatprep.subr.mxu0 %v78
    %122 = vmatpush1.msra.mxu0 %v77
    %123 = vmatprep.subr.mxu0 %v80
    %124 = vmatpush1.msra.mxu0 %v79
    %125 = vmatprep.subr.mxu0 %v82
    %126 = vmatpush1.msra.mxu0 %v81
    %127 = vmatprep.subr.mxu0 %v84
    %128 = vmatpush1.msra.mxu0 %v83
    %129 = vmatprep.subr.mxu0 %v86
    %130 = vmatpush1.msra.mxu0 %v85
    %131 = vmatprep.subr.mxu0 %v88
    %132 = vmatpush1.msra.mxu0 %v87
    %133 = vmatprep.subr.mxu0 %v90
    %134 = vmatpush1.msra.mxu0 %v89
    %135 = vmatprep.subr.mxu0 %v92
    %136 = vmatpush1.msra.mxu0 %v91
    %137 = vmatprep.subr.mxu0 %v94
    %138 = vmatpush1.msra.mxu0 %v93
    %139 = vmatprep.subr.mxu0 %v96
    %140 = vmatpush1.msra.mxu0 %v95
    %141 = vmatprep.subr.mxu0 %v98
    %142 = vmatpush1.msra.mxu0 %v97
    %143 = vmatprep.subr.mxu0 0.0
    %144 = vmatpush1.msra.mxu0 0.0
    %145 = vmatprep.subr.mxu0 0.0
    %146 = vmatpush1.msra.mxu0 0.0
    %147 = vmatprep.subr.mxu0 0.0
    %148 = vmatpush1.msra.mxu0 0.0
    %149 = vmatprep.subr.mxu0 0.0
    %150 = vmatpush1.msra.mxu0 0.0
    %151 = vmatprep.subr.mxu0 0.0
    %152 = vmatpush1.msra.mxu0 0.0
    %153 = vmatprep.subr.mxu0 0.0
    %154 = vmatpush1.msra.mxu0 0.0
    %155 = vmatprep.subr.mxu0 0.0
    %156 = vmatpush1.msra.mxu0 0.0
    %157 = vmatprep.subr.mxu0 0.0
    %158 = vmatpush1.msra.mxu0 0.0
    %159 = vmatprep.subr.mxu0 0.0
    %160 = vmatpush1.msra.mxu0 0.0
    %161 = vmatprep.subr.mxu0 0.0
    %162 = vmatpush1.msra.mxu0 0.0
    %163 = vmatprep.subr.mxu0 0.0
    %164 = vmatpush1.msra.mxu0 0.0
    %165 = vmatprep.subr.mxu0 0.0
    %166 = vmatpush1.msra.mxu0 0.0
    %167 = vmatprep.subr.mxu0 0.0
    %168 = vmatpush1.msra.mxu0 0.0
    %169 = vmatprep.subr.mxu0 0.0
    %170 = vmatpush1.msra.mxu0 0.0
    %171 = vmatprep.subr.mxu0 0.0
    %172 = vmatpush1.msra.mxu0 0.0
    %173 = vmatprep.subr.mxu0 0.0
    %174 = vmatpush1.msra.mxu0 0.0
    %175 = vmatprep.mubr.f32.mxu0 0.0
    %176 = vmatmul.mubr.f32.gmra.mrb[0].mxu0 %v66
    %v177 = vpop.f32.mrb[0].mxu0
    %v178 = vadd.f32 %v104, %v177
    %v179 = vpop.f32.mrb[0].mxu0
    %v180 = vadd.f32 %v108, %v179
    %181 = vdwg.mxu0
    %v182 = vmax.f32 %v178, 0.0
    %v183 = vld [vmem:[#allocation7] sm:$0xff]
    %v184 = vld [vmem:[#allocation7 + $0x8] sm:$0xff]
    %v185 = vld [vmem:[#allocation7 + $0x10] sm:$0xff]
    %v186 = vld [vmem:[#allocation7 + $0x18] sm:$0xff]
    %v187 = vld [vmem:[#allocation7 + $0x20] sm:$0xff]
    %v188 = vld [vmem:[#allocation7 + $0x28] sm:$0xff]
    %v189 = vld [vmem:[#allocation7 + $0x30] sm:$0xff]
    %v190 = vld [vmem:[#allocation7 + $0x38] sm:$0xff]
    %v191 = vld [vmem:[#allocation7 + $0x40] sm:$0xff]
    %v192 = vld [vmem:[#allocation7 + $0x48] sm:$0xff]
    %v193 = vld [vmem:[#allocation7 + $0x50] sm:$0xff]
    %v194 = vld [vmem:[#allocation7 + $0x58] sm:$0xff]
    %v195 = vld [vmem:[#allocation7 + $0x60] sm:$0xff]
    %v196 = vld [vmem:[#allocation7 + $0x68] sm:$0xff]
    %v197 = vld [vmem:[#allocation7 + $0x70] sm:$0xff]
    %v198 = vld [vmem:[#allocation7 + $0x78] sm:$0xff]
    %v199 = vld [vmem:[%s4] sm:$0x1]
    %v201 = vlaneseq
    %v202 = vshrl.u32 %v201, 7
    %v203 = vsub.s32 0, %v202
    %v204 = vrot.slane %v199, %v203
    %206 = vmatprep.subr.mxu0 0.0
    %207 = vmatpush1.msra.mxu0 %v183
    %208 = vmatprep.subr.mxu0 0.0
    %209 = vmatpush1.msra.mxu0 %v184
    %210 = vmatprep.subr.mxu0 0.0
    %211 = vmatpush1.msra.mxu0 %v185
    %212 = vmatprep.subr.mxu0 0.0
    %213 = vmatpush1.msra.mxu0 %v186
    %214 = vmatprep.subr.mxu0 0.0
    %215 = vmatpush1.msra.mxu0 %v187
    %216 = vmatprep.subr.mxu0 0.0
    %217 = vmatpush1.msra.mxu0 %v188
    %218 = vmatprep.subr.mxu0 0.0
    %219 = vmatpush1.msra.mxu0 %v189
    %220 = vmatprep.subr.mxu0 0.0
    %221 = vmatpush1.msra.mxu0 %v190
    %222 = vmatprep.subr.mxu0 0.0
    %223 = vmatpush1.msra.mxu0 %v191
    %224 = vmatprep.subr.mxu0 0.0
    %225 = vmatpush1.msra.mxu0 %v192
    %226 = vmatprep.subr.mxu0 0.0
    %227 = vmatpush1.msra.mxu0 %v193
    %228 = vmatprep.subr.mxu0 0.0
    %229 = vmatpush1.msra.mxu0 %v194
    %230 = vmatprep.subr.mxu0 0.0
    %231 = vmatpush1.msra.mxu0 %v195
    %232 = vmatprep.subr.mxu0 0.0
    %233 = vmatpush1.msra.mxu0 %v196
    %234 = vmatprep.subr.mxu0 0.0
    %235 = vmatpush1.msra.mxu0 %v197
    %236 = vmatprep.subr.mxu0 0.0
    %237 = vmatpush1.msra.mxu0 %v198
    %238 = vmatprep.subr.mxu0 0.0
    %239 = vmatpush1.msra.mxu0 0.0
    %240 = vmatprep.subr.mxu0 0.0
    %241 = vmatpush1.msra.mxu0 0.0
    %242 = vmatprep.subr.mxu0 0.0
    %243 = vmatpush1.msra.mxu0 0.0
    %244 = vmatprep.subr.mxu0 0.0
    %245 = vmatpush1.msra.mxu0 0.0
    %246 = vmatprep.subr.mxu0 0.0
    %247 = vmatpush1.msra.mxu0 0.0
    %248 = vmatprep.subr.mxu0 0.0
    %249 = vmatpush1.msra.mxu0 0.0
    %250 = vmatprep.subr.mxu0 0.0
    %251 = vmatpush1.msra.mxu0 0.0
    %252 = vmatprep.subr.mxu0 0.0
    %253 = vmatpush1.msra.mxu0 0.0
    %254 = vmatprep.subr.mxu0 0.0
    %255 = vmatpush1.msra.mxu0 0.0
    %256 = vmatprep.subr.mxu0 0.0
    %257 = vmatpush1.msra.mxu0 0.0
    %258 = vmatprep.subr.mxu0 0.0
    %259 = vmatpush1.msra.mxu0 0.0
    %260 = vmatprep.subr.mxu0 0.0
    %261 = vmatpush1.msra.mxu0 0.0
    %262 = vmatprep.subr.mxu0 0.0
    %263 = vmatpush1.msra.mxu0 0.0
    %264 = vmatprep.subr.mxu0 0.0
    %265 = vmatpush1.msra.mxu0 0.0
    %266 = vmatprep.subr.mxu0 0.0
    %267 = vmatpush1.msra.mxu0 0.0
    %268 = vmatprep.subr.mxu0 0.0
    %269 = vmatpush1.msra.mxu0 0.0
    %270 = vmatprep.mubr.f32.mxu0 0.0
    %271 = vmatmul.mubr.f32.gmra.mrb[0].mxu0 %v182
    %v272 = vpop.f32.mrb[0].mxu0
    %v273 = vadd.f32 %v204, %v272
    %v274 = vpop.f32.mrb[0].mxu0
    %275 = vdwg.mxu0
    %v276 = vadd.f32 %v273, %v180
    %277 = vadd.xlane.f32.xlu0 %v276
    %v278 = vpop.xlane.xlu0 %277
    %v279 = vmul.f32 %v278, 0.03125
    %v280 = vlaneseq
    %v281 = vand.u32 %v280, 127
    %vm282 = vcmp.lt.s32.totalorder %v281, 32
    %v283 = vsub.f32 %v276, %v279
    %v284 = vsel %vm282, %v283, 0.0
    %v285 = vmul.f32 %v284, %v284
    %286 = vadd.xlane.f32.xlu0 %v285
    %v287 = vpop.xlane.xlu0 %286
    %v288 = vmul.f32 %v287, 0.03125
    %v289 = vadd.f32 %v288, 1e-05
    %v290 = vrsqrt.pop %v289
    %v291 = vmul.f32 %v283, %v290
    %v292 = vld [vmem:[%s5] sm:$0x1]
    %v294 = vlaneseq
    %v295 = vshrl.u32 %v294, 7
    %v296 = vsub.s32 0, %v295
    %v297 = vrot.slane %v292, %v296
    %v299 = vmul.f32 %v291, %v297
    %v300 = vld [vmem:[%s6] sm:$0x1]
    %v302 = vlaneseq
    %v303 = vshrl.u32 %v302, 7
    %v304 = vsub.s32 0, %v303
    %v305 = vrot.slane %v300, %v304
    %v307 = vadd.f32 %v299, %v305
    %308 = vst [vmem:[#allocation8] sm:$0xff] %v307
    // Predicated region
    $region42: #{tpu_custom_call.1} parent=1 // pred_check
      _
    $region43: #{tpu_custom_call.1} parent=1 // pred_check_branch
      %310 = sbr.rel (0) target = $region45
    $region44: #{tpu_custom_call.1} parent=1 // pred_region
      %s312 = ssub.s32 128, 128
      %313 = vsyncadd [#allocation4], %s312
      %s315 = sshll.u32 [#allocation8], 4
      %s316 = int_to_ptr.vmem [resolvable:$true] %s315
      %318 = dma.vmem_to_hbm [thread:$0]  %s316, 128, %s7, [#allocation4]
    $region45: #{tpu_custom_call.1} parent=1 // pred_fallthru
      _
    // Predicated region
    $region46: #{tpu_custom_call.1} parent=1 // pred_check
      _
    $region47: #{tpu_custom_call.1} parent=1 // pred_check_branch
      %320 = sbr.rel (0) target = $region49
    $region48: #{tpu_custom_call.1} parent=1 // pred_region
      %321 = dma.done [#allocation4], 128
    $region49: #{tpu_custom_call.1} parent=1 // pred_fallthru
      _
    %322 = vsyncpa [#allocation3], 1
    %323 = vsyncpa [#allocation6], 1
    %324 = vsyncpa [#allocation4], 1

</llo_original>
